<compile_context>
chip_gen: v7x
topology: tpu7x:2x2x1
jax: 0.10.0
libtpu: 0.0.40
codegen_flags: <defaults>
</compile_context>

<pallas_src>
import math

import jax
import jax.numpy as jnp
from jax.experimental import pallas as pl
from jax.experimental.pallas import tpu as pltpu

_LANE = 128


def _copy_kernel(x_ref, o_ref):
    # Dense pass-through of one tile.
    o_ref[...] = x_ref[...]


def _sublane_multiple(dtype) -> int:
    # Sub-32-bit dtypes pack along sublanes: 8 rows for 4-byte, 16 for 2-byte, 32 for 1-byte.
    itemsize = jnp.dtype(dtype).itemsize
    return max(8, 32 // max(itemsize, 1))


def _vmem_budgets():
    """Generation-aware (per-block budget, scoped-VMEM limit).

    v5e/v6e: 128 MiB physical VMEM -> 8 MiB blocks, 64 MiB scoped limit.
    v7x:      64 MiB physical VMEM -> 4 MiB blocks, 32 MiB scoped limit.
    Always leaves ample headroom above the 2-in + 2-out double-buffer footprint.
    """
    try:
        cap = pltpu.get_tpu_info().vmem_capacity_bytes
    except Exception:  # pragma: no cover - conservative fallback
        cap = 64 * 1024 * 1024
    if cap >= 128 * 1024 * 1024:
        return 8 * 1024 * 1024, 64 * 1024 * 1024
    return 4 * 1024 * 1024, 32 * 1024 * 1024


def _lane_dense_2d(x: jax.Array) -> jax.Array:
    """Free reshape of a contiguous buffer to a lane-dense 2D view (rows, k*128)."""
    n = math.prod(x.shape) if x.ndim else 1
    for w in (2048, 1024, 512, 256, 128):
        if n % w == 0:
            return x.reshape(n // w, w)
    # Ragged total element count: single strip; Pallas masks the partial lane tail.
    return x.reshape(1, n)


def _pick_block(rows: int, cols: int, dtype, per_block_budget: int):
    itemsize = jnp.dtype(dtype).itemsize
    align = _sublane_multiple(dtype)
    row_bytes = max(cols * itemsize, 1)

    if row_bytes > per_block_budget:
        # Degenerate ragged strip wider than the budget: tile the lane axis instead.
        block_cols = max((per_block_budget // (itemsize * _LANE)) * _LANE, _LANE)
        return (rows if rows == 1 else min(rows, align)), min(block_cols, cols)

    max_rows = per_block_budget // row_bytes
    if max_rows >= rows:
        block_rows = rows
        total_bytes = rows * cols * itemsize
        # v7x megacore: for multi-MiB copies keep >=2 blocks on the parallel row axis
        # so both TensorCores (and their DMA issue capacity) get work.
        if total_bytes > (2 * 1024 * 1024) and rows >= 2 * align:
            half = pl.cdiv(rows, 2)
            block_rows = max(((half + align - 1) // align) * align, align)
    else:
        block_rows = max((max_rows // align) * align, align)
    return block_rows, cols


def _pallas_dense_copy_2d(x2: jax.Array, per_block: int, vmem_limit: int) -> jax.Array:
    rows, cols = x2.shape
    itemsize = jnp.dtype(x2.dtype).itemsize
    block_rows, block_cols = _pick_block(rows, cols, x2.dtype, per_block)
    grid = (pl.cdiv(rows, block_rows), pl.cdiv(cols, block_cols))

    return pl.pallas_call(
        _copy_kernel,
        out_shape=jax.ShapeDtypeStruct((rows, cols), x2.dtype),
        grid_spec=pltpu.PrefetchScalarGridSpec(
            num_scalar_prefetch=0,
            grid=grid,
            in_specs=[pl.BlockSpec((block_rows, block_cols), lambda i, j: (i, j))],
            out_specs=pl.BlockSpec((block_rows, block_cols), lambda i, j: (i, j)),
        ),
        cost_estimate=pl.CostEstimate(
            flops=0, transcendentals=0, bytes_accessed=2 * rows * cols * itemsize),
        compiler_params=pltpu.CompilerParams(
            dimension_semantics=("parallel", "parallel"),
            vmem_limit_bytes=vmem_limit),
    )(x2)


def base_feature_forward(parsed_value: jax.Array, materialize_copy: bool = False) -> jax.Array:
    """Pallas implementation of BaseFeature.forward (dense pass-through of parsed_value).

    Default: true identity — no kernel launch, no HBM traffic.
    materialize_copy=True: produce a fresh buffer via a lane-dense, bandwidth-optimal
    Pallas copy (useful when the output's lifetime must be decoupled from the input).
    """
    if not materialize_copy:
        return parsed_value

    n = math.prod(parsed_value.shape) if parsed_value.ndim else 1
    if n == 0:
        return parsed_value

    per_block, vmem_limit = _vmem_budgets()
    x2 = _lane_dense_2d(parsed_value)
    out2 = _pallas_dense_copy_2d(x2, per_block, vmem_limit)
    return out2.reshape(parsed_value.shape)


# TODO(synk): BaseFeature.parse / output_dim / subclass-specific to_dense (e.g. embedding
# lookup) are abstract with no concrete definition in this module; only the dense
# pass-through of forward() is implemented. For very large materialized copies a direct
# HBM->HBM make_async_copy chain (memory_space=pl.ANY) would skip the VMEM round-trip.


if __name__ == "__main__":
    key = jax.random.PRNGKey(0)
    k0, k1, k2 = jax.random.split(key, 3)

    # 1) Default identity fast path (no kernel) -- the common BaseFeature.forward case.
    pv = jax.random.normal(k0, (2, 16), dtype=jnp.float32)
    out = base_feature_forward(pv)
    jax.block_until_ready(out)
    assert out.shape == pv.shape and out.dtype == pv.dtype
    assert bool(jnp.array_equal(out, pv))

    # 2) Materialized copy through the Pallas kernel; 2*4*16 = 128 elements -> lane-dense
    #    (1, 128) view, unmasked stores.
    pv3d = jax.random.normal(k1, (2, 4, 16), dtype=jnp.float32)
    out3d = base_feature_forward(pv3d, materialize_copy=True)
    jax.block_until_ready(out3d)
    assert out3d.shape == pv3d.shape and out3d.dtype == pv3d.dtype
    assert bool(jnp.array_equal(out3d, pv3d))

    # 3) Materialized copy, ragged element count (17*96 = 1632) + sub-32-bit dtype,
    #    exercising the full-dims fallback block.
    pv_bf16 = jax.random.normal(k2, (17, 96), dtype=jnp.float32).astype(jnp.bfloat16)
    outb = base_feature_forward(pv_bf16, materialize_copy=True)
    jax.block_until_ready(outb)
    assert outb.shape == pv_bf16.shape and outb.dtype == pv_bf16.dtype
    assert bool(jnp.array_equal(outb, pv_bf16))

    print("KERNEL_OK")
</pallas_src>

<mosaic_0001>
module attributes {stable_mosaic.version = 11 : i64} {
  func.func @_copy_kernel(%arg0: i32, %arg1: i32, %arg2: memref<1x128xf32, #tpu.memory_space<vmem>>, %arg3: memref<1x128xf32, #tpu.memory_space<vmem>>) attributes {dimension_semantics = [#tpu.dimension_semantics<parallel>, #tpu.dimension_semantics<parallel>], iteration_bounds = array<i64: 1, 1>, scalar_prefetch = 0 : i64, scratch_operands = 0 : i64, tpu.core_type = #tpu.core_type<tc>, window_params = [{transform_indices = @transform_0, window_bounds = array<i64: 1, 128>}, {transform_indices = @transform_1, window_bounds = array<i64: 1, 128>}]} {
    %c0 = arith.constant 0 : index
    %c0_0 = arith.constant 0 : index
    %0 = vector.load %arg2[%c0, %c0_0] : memref<1x128xf32, #tpu.memory_space<vmem>>, vector<1x128xf32>
    %c0_1 = arith.constant 0 : index
    %c0_2 = arith.constant 0 : index
    %1 = vector.load %arg3[%c0_1, %c0_2] : memref<1x128xf32, #tpu.memory_space<vmem>>, vector<1x128xf32>
    tpu.vector_store %arg3[%c0_1, %c0_2], %0 {strides = array<i32>} : memref<1x128xf32, #tpu.memory_space<vmem>>, vector<1x128xf32>,
    return
  }
  func.func @transform_0(%arg0: i32, %arg1: i32) -> (i32, i32) {
    %c0_i32 = arith.constant 0 : i32
    return %arg0, %arg1 : i32, i32
  }
  func.func @transform_1(%arg0: i32, %arg1: i32) -> (i32, i32) {
    %c0_i32 = arith.constant 0 : i32
    return %arg0, %arg1 : i32, i32
  }
}

</mosaic_0001>

<llo_original>
// kernel: tpu_custom_call.1
$region0: #{tpu_custom_call.1}
  #allocation0 [shape = 'u32[]', space=smem, size = 0x4, offset = 0x4, fixed_abs, tag = 'smem constant byte address 0x4 - core index']
  #allocation1 [shape = 'u32[144,128]{1,0:T(1,128)}', space=vmem, size = 0x12000, scoped, tag = 'internal scratch']
  %s0 = inlined_call_operand.hbm [shape: f32[1,128], index: 0, kind: input, shape index: {}]
  %s1 = inlined_call_operand.hbm [shape: f32[1,128], index: 1, kind: output, shape index: {}]
  %s2 = sld [smem:[#allocation0]]
  $region18: #{tpu_custom_call.1} parent=0
    _
  %s4 = ssub.s32 1, %s2
  %s5 = scalar_select 0, %s4, %s2
  $region1: #{tpu_custom_call.1} parent=0
    #allocation2 [shape = 'u8[512]{0}', space=vmem, size = 0x400, scoped, tag = 'input window, operand 0, single buffered']
    #allocation3 [shape = 's32[1]{0}', space=sflag, size = 0x4, scoped, tag = 'scoped memory for tpu_custom_call.1']
    #allocation4 [shape = 's32[1]{0}', space=sflag, size = 0x4, scoped, tag = 'scoped memory for tpu_custom_call.1']
    #allocation5 [shape = 'u8[512]{0}', space=vmem, size = 0x400, scoped, tag = 'output window, operand 0, single buffered']
    %6 = vsyncpa [#allocation3], 0
    %7 = vsyncpa [#allocation4], 0
    // Predicated region
    $region2: #{tpu_custom_call.1} parent=1 // pred_check
      _
    $region3: #{tpu_custom_call.1} parent=1 // pred_check_branch
      %9 = sbr.rel (0) target = $region5
    $region4: #{tpu_custom_call.1} parent=1 // pred_region
      %s11 = ssub.s32 16, 16
      %12 = vsyncadd [#allocation3], %s11
      %s14 = sshll.u32 [#allocation2], 4
      %s15 = int_to_ptr.vmem [resolvable:$true] %s14
      %17 = dma.hbm_to_vmem [thread:$0]  %s0, 16, %s15, [#allocation3]
    $region5: #{tpu_custom_call.1} parent=1 // pred_fallthru
      _
    // Predicated region
    $region6: #{tpu_custom_call.1} parent=1 // pred_check
      _
    $region7: #{tpu_custom_call.1} parent=1 // pred_check_branch
      %19 = sbr.rel (0) target = $region9
    $region8: #{tpu_custom_call.1} parent=1 // pred_region
      %20 = dma.done [#allocation3], 16
    $region9: #{tpu_custom_call.1} parent=1 // pred_fallthru
      _
    %v21 = vld [vmem:[#allocation2] sm:$0x1]
    %22 = vst [vmem:[#allocation5] sm:$0x1] %v21
    // Predicated region
    $region10: #{tpu_custom_call.1} parent=1 // pred_check
      _
    $region11: #{tpu_custom_call.1} parent=1 // pred_check_branch
      %24 = sbr.rel (0) target = $region13
    $region12: #{tpu_custom_call.1} parent=1 // pred_region
      %s26 = ssub.s32 16, 16
      %27 = vsyncadd [#allocation4], %s26
      %s29 = sshll.u32 [#allocation5], 4
      %s30 = int_to_ptr.vmem [resolvable:$true] %s29
      %32 = dma.vmem_to_hbm [thread:$0]  %s30, 16, %s1, [#allocation4]
    $region13: #{tpu_custom_call.1} parent=1 // pred_fallthru
      _
    // Predicated region
    $region14: #{tpu_custom_call.1} parent=1 // pred_check
      _
    $region15: #{tpu_custom_call.1} parent=1 // pred_check_branch
      %34 = sbr.rel (0) target = $region17
    $region16: #{tpu_custom_call.1} parent=1 // pred_region
      %35 = dma.done [#allocation4], 16
    $region17: #{tpu_custom_call.1} parent=1 // pred_fallthru
      _
    %36 = vsyncpa [#allocation3], 1
    %37 = vsyncpa [#allocation4], 1

</llo_original>
